<compile_context>
chip_gen: v6e
topology: v6e:2x2x1
jax: 0.10.0
libtpu: 0.0.40
codegen_flags: <defaults>
</compile_context>

<pallas_src>
import jax
import jax.numpy as jnp
from jax.experimental import pallas as pl
from jax.experimental.pallas import tpu as pltpu

IN_DIM = 28 * 28      # 784
HID_DIM = 300
OUT_DIM = 10
HID_PAD = 384         # 300 rounded up to 3 * 128 lanes
OUT_PAD = 128         # 10 rounded up to one full 128-lane vreg (unmasked vst)


def _round_up(x, m):
    return (x + m - 1) // m * m


def _mlp_kernel(x_ref, w1_ref, b1_ref, w2_ref, b2_ref, o_ref):
    # Hidden layer: (TILE_B, 784) bf16 @ (784, 384) bf16 -> f32 accumulator.
    h = jnp.dot(x_ref[...], w1_ref[...], preferred_element_type=jnp.float32)
    h = jnp.maximum(h + b1_ref[...], 0.0)          # bias add + ReLU in f32
    # Output layer: (TILE_B, 384) bf16 @ (384, 128) bf16 -> f32 accumulator.
    o = jnp.dot(h.astype(jnp.bfloat16), w2_ref[...],
                preferred_element_type=jnp.float32)
    o_ref[...] = (o + b2_ref[...]).astype(o_ref.dtype)


def prepare_params(w1, b1, w2, b2):
    """One-time param prep: zero-pad to lane-aligned shapes, cast weights to bf16.

    w1: (784, 300) -> (784, 384) bf16      b1: (300,) -> (1, 384) f32
    w2: (300, 10)  -> (384, 128) bf16      b2: (10,)  -> (1, 128) f32

    Zero padding is numerically exact: ReLU(0) = 0 and zero rows of w2
    contribute nothing; padded output columns are sliced off in the wrapper.
    """
    w1p = jnp.zeros((IN_DIM, HID_PAD), jnp.bfloat16).at[:, :HID_DIM].set(
        w1.astype(jnp.bfloat16))
    b1p = jnp.zeros((1, HID_PAD), jnp.float32).at[0, :HID_DIM].set(
        b1.astype(jnp.float32))
    w2p = jnp.zeros((HID_PAD, OUT_PAD), jnp.bfloat16).at[:HID_DIM, :OUT_DIM].set(
        w2.astype(jnp.bfloat16))
    b2p = jnp.zeros((1, OUT_PAD), jnp.float32).at[0, :OUT_DIM].set(
        b2.astype(jnp.float32))
    return w1p, b1p, w2p, b2p


def net_model_forward(x, params):
    """Forward pass of NetModel.

    x: anything that flattens to (-1, 784), e.g. (B, 1, 28, 28)
    params: output of prepare_params()
    returns: (B, 10) float32
    """
    w1p, b1p, w2p, b2p = params

    x2d = x.reshape(-1, IN_DIM).astype(jnp.bfloat16)   # glue: x.view(-1, 784)
    batch = x2d.shape[0]

    # Batch tile: up to 256 rows (multiple of 128 keeps v5e's 4x128 MXU full,
    # multiple of 16 satisfies bf16 sublane packing for small batches).
    tile_b = min(256, _round_up(batch, 16))
    batch_pad = _round_up(batch, tile_b)
    if batch_pad != batch:
        x2d = jnp.pad(x2d, ((0, batch_pad - batch), (0, 0)))

    out = pl.pallas_call(
        _mlp_kernel,
        out_shape=jax.ShapeDtypeStruct((batch_pad, OUT_PAD), jnp.float32),
        grid=(batch_pad // tile_b,),
        in_specs=[
            # x is batch-tiled; 784 == full array dim so the lane rule is met.
            pl.BlockSpec((tile_b, IN_DIM), lambda i: (i, 0)),
            # weights / biases: constant index_map -> stay VMEM-resident.
            pl.BlockSpec((IN_DIM, HID_PAD), lambda i: (0, 0)),
            pl.BlockSpec((1, HID_PAD), lambda i: (0, 0)),
            pl.BlockSpec((HID_PAD, OUT_PAD), lambda i: (0, 0)),
            pl.BlockSpec((1, OUT_PAD), lambda i: (0, 0)),
        ],
        out_specs=pl.BlockSpec((tile_b, OUT_PAD), lambda i: (i, 0)),
        compiler_params=pltpu.CompilerParams(
            dimension_semantics=("parallel",)),
    )(x2d, w1p, b1p, w2p, b2p)

    return out[:batch, :OUT_DIM]


def init_params(key):
    """Deterministic init mimicking torch.nn.Linear default (uniform +/- 1/sqrt(fan_in)).

    Weights are stored as (in_features, out_features) -- the transpose of
    PyTorch's (out, in) -- so the kernel computes y = x @ W + b directly.
    """
    k1, k2, k3, k4 = jax.random.split(key, 4)
    bound1 = 1.0 / jnp.sqrt(jnp.float32(IN_DIM))
    bound2 = 1.0 / jnp.sqrt(jnp.float32(HID_DIM))
    w1 = jax.random.uniform(k1, (IN_DIM, HID_DIM), jnp.float32, -bound1, bound1)
    b1 = jax.random.uniform(k2, (HID_DIM,), jnp.float32, -bound1, bound1)
    w2 = jax.random.uniform(k3, (HID_DIM, OUT_DIM), jnp.float32, -bound2, bound2)
    b2 = jax.random.uniform(k4, (OUT_DIM,), jnp.float32, -bound2, bound2)
    return w1, b1, w2, b2


if __name__ == "__main__":
    key = jax.random.PRNGKey(0)
    k_x, k_p = jax.random.split(key)

    # Small batch of MNIST-like inputs: (B, 1, 28, 28) NCHW, flattened in forward.
    x = jax.random.normal(k_x, (8, 1, 28, 28), dtype=jnp.float32)
    w1, b1, w2, b2 = init_params(k_p)
    params = prepare_params(w1, b1, w2, b2)     # one-time pad + bf16 cast

    out = net_model_forward(x, params)
    jax.block_until_ready(out)

    # Reference check in plain JAX (f32); loose tolerance for bf16 operands.
    x2d = x.reshape(-1, IN_DIM)
    ref = jnp.maximum(x2d @ w1 + b1, 0.0) @ w2 + b2
    assert out.shape == (8, OUT_DIM)
    assert jnp.allclose(out, ref, atol=5e-2, rtol=5e-2), (
        float(jnp.max(jnp.abs(out - ref))))

    print("KERNEL_OK")
</pallas_src>

<mosaic_0001>
module attributes {stable_mosaic.version = 11 : i64} {
  func.func @_mlp_kernel(%arg0: i32, %arg1: memref<16x784xbf16, #tpu.memory_space<vmem>>, %arg2: memref<784x384xbf16, #tpu.memory_space<vmem>>, %arg3: memref<1x384xf32, #tpu.memory_space<vmem>>, %arg4: memref<384x128xbf16, #tpu.memory_space<vmem>>, %arg5: memref<1x128xf32, #tpu.memory_space<vmem>>, %arg6: memref<16x128xf32, #tpu.memory_space<vmem>>) attributes {dimension_semantics = [#tpu.dimension_semantics<parallel>], iteration_bounds = array<i64: 1>, scalar_prefetch = 0 : i64, scratch_operands = 0 : i64, tpu.core_type = #tpu.core_type<tc>, window_params = [{transform_indices = @transform_0, window_bounds = array<i64: 16, 784>}, {pipeline_mode = #tpu.pipeline_mode<synchronous>, transform_indices = @transform_1, window_bounds = array<i64: 784, 384>}, {pipeline_mode = #tpu.pipeline_mode<synchronous>, transform_indices = @transform_2, window_bounds = array<i64: 1, 384>}, {pipeline_mode = #tpu.pipeline_mode<synchronous>, transform_indices = @transform_3, window_bounds = array<i64: 384, 128>}, {pipeline_mode = #tpu.pipeline_mode<synchronous>, transform_indices = @transform_4, window_bounds = array<i64: 1, 128>}, {transform_indices = @transform_5, window_bounds = array<i64: 16, 128>}]} {
    %c0 = arith.constant 0 : index
    %c0_0 = arith.constant 0 : index
    %0 = vector.load %arg1[%c0, %c0_0] : memref<16x784xbf16, #tpu.memory_space<vmem>>, vector<16x784xbf16>
    %c0_1 = arith.constant 0 : index
    %c0_2 = arith.constant 0 : index
    %1 = vector.load %arg2[%c0_1, %c0_2] : memref<784x384xbf16, #tpu.memory_space<vmem>>, vector<784x384xbf16>
    %cst = arith.constant dense<0.000000e+00> : vector<16x384xf32>
    %2 = tpu.matmul %0, %1, %cst {dimension_numbers = #tpu.dot_dimension_numbers<[1], [0], [0], [1], [0, 0, 1, 1], [], []>} : vector<16x784xbf16>, vector<784x384xbf16>, vector<16x384xf32> -> vector<16x384xf32>
    %c0_3 = arith.constant 0 : index
    %c0_4 = arith.constant 0 : index
    %3 = vector.load %arg3[%c0_3, %c0_4] : memref<1x384xf32, #tpu.memory_space<vmem>>, vector<1x384xf32>
    %4 = vector.broadcast %3 : vector<1x384xf32> to vector<16x384xf32>
    %5 = arith.addf %2, %4 : vector<16x384xf32>
    %cst_5 = arith.constant 0.000000e+00 : f32
    %6 = vector.broadcast %cst_5 : f32 to vector<16x384xf32>
    %7 = arith.maximumf %5, %6 : vector<16x384xf32>
    %8 = arith.truncf %7 : vector<16x384xf32> to vector<16x384xbf16>
    %c0_6 = arith.constant 0 : index
    %c0_7 = arith.constant 0 : index
    %9 = vector.load %arg4[%c0_6, %c0_7] : memref<384x128xbf16, #tpu.memory_space<vmem>>, vector<384x128xbf16>
    %cst_8 = arith.constant dense<0.000000e+00> : vector<16x128xf32>
    %10 = tpu.matmul %8, %9, %cst_8 {dimension_numbers = #tpu.dot_dimension_numbers<[1], [0], [0], [1], [0, 0, 1, 1], [], []>} : vector<16x384xbf16>, vector<384x128xbf16>, vector<16x128xf32> -> vector<16x128xf32>
    %c0_9 = arith.constant 0 : index
    %c0_10 = arith.constant 0 : index
    %11 = vector.load %arg5[%c0_9, %c0_10] : memref<1x128xf32, #tpu.memory_space<vmem>>, vector<1x128xf32>
    %12 = vector.broadcast %11 : vector<1x128xf32> to vector<16x128xf32>
    %13 = arith.addf %10, %12 : vector<16x128xf32>
    %c0_11 = arith.constant 0 : index
    %c0_12 = arith.constant 0 : index
    %14 = vector.load %arg6[%c0_11, %c0_12] : memref<16x128xf32, #tpu.memory_space<vmem>>, vector<16x128xf32>
    tpu.vector_store %arg6[%c0_11, %c0_12], %13 {strides = array<i32>} : memref<16x128xf32, #tpu.memory_space<vmem>>, vector<16x128xf32>,
    return
  }
  func.func @transform_0(%arg0: i32) -> (i32, i32) {
    %c0_i32 = arith.constant 0 : i32
    %c0_i32_0 = arith.constant 0 : i32
    return %arg0, %c0_i32 : i32, i32
  }
  func.func @transform_1(%arg0: i32) -> (i32, i32) {
    %c0_i32 = arith.constant 0 : i32
    %c0_i32_0 = arith.constant 0 : i32
    %c0_i32_1 = arith.constant 0 : i32
    return %c0_i32, %c0_i32_0 : i32, i32
  }
  func.func @transform_2(%arg0: i32) -> (i32, i32) {
    %c0_i32 = arith.constant 0 : i32
    %c0_i32_0 = arith.constant 0 : i32
    %c0_i32_1 = arith.constant 0 : i32
    return %c0_i32, %c0_i32_0 : i32, i32
  }
  func.func @transform_3(%arg0: i32) -> (i32, i32) {
    %c0_i32 = arith.constant 0 : i32
    %c0_i32_0 = arith.constant 0 : i32
    %c0_i32_1 = arith.constant 0 : i32
    return %c0_i32, %c0_i32_0 : i32, i32
  }
  func.func @transform_4(%arg0: i32) -> (i32, i32) {
    %c0_i32 = arith.constant 0 : i32
    %c0_i32_0 = arith.constant 0 : i32
    %c0_i32_1 = arith.constant 0 : i32
    return %c0_i32, %c0_i32_0 : i32, i32
  }
  func.func @transform_5(%arg0: i32) -> (i32, i32) {
    %c0_i32 = arith.constant 0 : i32
    %c0_i32_0 = arith.constant 0 : i32
    return %arg0, %c0_i32 : i32, i32
  }
}

</mosaic_0001>

<llo_original>
// kernel: tpu_custom_call.1
$region0: #{tpu_custom_call.1}
  #allocation0 [shape = 'u32[]', space=smem, size = 0x4, offset = 0x4, fixed_abs, tag = 'smem constant byte address 0x4 - core index']
  #allocation1 [shape = 'u32[144,128]{1,0:T(1,128)}', space=vmem, size = 0x12000, scoped, tag = 'internal scratch']
  %s0 = inlined_call_operand.hbm [shape: bf16[16,784], index: 0, kind: input, shape index: {}]
  %s1 = inlined_call_operand.hbm [shape: bf16[784,384], index: 1, kind: input, shape index: {}]
  %s2 = inlined_call_operand.vmem [shape: f32[1,384], index: 2, kind: input, shape index: {}]
  %s3 = inlined_call_operand.hbm [shape: bf16[384,128], index: 3, kind: input, shape index: {}]
  %s4 = inlined_call_operand.vmem [shape: f32[1,128], index: 4, kind: input, shape index: {}]
  %s5 = inlined_call_operand.hbm [shape: f32[16,128], index: 5, kind: output, shape index: {}]
  %s6 = sld [smem:[#allocation0]]
  $region42: #{tpu_custom_call.1} parent=0
    _
  %s8 = ssub.s32 1, %s6
  %s9 = scalar_select 0, %s8, %s6
  $region1: #{tpu_custom_call.1} parent=0
    #allocation2 [shape = 'u8[28672]{0}', space=vmem, size = 0x7000, scoped, tag = 'input window, operand 0, single buffered']
    #allocation3 [shape = 's32[1]{0}', space=sflag, size = 0x4, scoped, tag = 'scoped memory for tpu_custom_call.1']
    #allocation4 [shape = 's32[1]{0}', space=sflag, size = 0x4, scoped, tag = 'scoped memory for tpu_custom_call.1']
    #allocation5 [shape = 'u8[602112]{0}', space=vmem, size = 0x93000, scoped, tag = 'input window, operand 1, single buffered']
    #allocation6 [shape = 's32[1]{0}', space=sflag, size = 0x4, scoped, tag = 'scoped memory for tpu_custom_call.1']
    #allocation7 [shape = 'u8[98304]{0}', space=vmem, size = 0x18000, scoped, tag = 'input window, operand 3, single buffered']
    #allocation8 [shape = 'u8[8192]{0}', space=vmem, size = 0x2000, scoped, tag = 'output window, operand 0, single buffered']
    %10 = vsyncpa [#allocation3], 0
    %11 = vsyncpa [#allocation6], 0
    %12 = vsyncpa [#allocation4], 0
    // Predicated region
    $region2: #{tpu_custom_call.1} parent=1 // pred_check
      _
    $region3: #{tpu_custom_call.1} parent=1 // pred_check_branch
      %14 = sbr.rel (0) target = $region5
    $region4: #{tpu_custom_call.1} parent=1 // pred_region
      %s16 = ssub.s32 896, 896
      %17 = vsyncadd [#allocation3], %s16
      %s18 = sshll.u32 [#allocation2], 4
      %s19 = int_to_ptr.vmem [resolvable:$true] %s18
      %24 = dma.hbm_to_vmem [thread:$0]  %s0, 896, %s19, [#allocation3], 448, 448, 28
    $region5: #{tpu_custom_call.1} parent=1 // pred_fallthru
      _
    // Predicated region
    $region6: #{tpu_custom_call.1} parent=1 // pred_check
      _
    $region7: #{tpu_custom_call.1} parent=1 // pred_check_branch
      %26 = sbr.rel (0) target = $region9
    $region8: #{tpu_custom_call.1} parent=1 // pred_region
      %s28 = ssub.s32 18816, 18816
      %29 = vsyncadd [#allocation6], %s28
      %s30 = sshll.u32 [#allocation5], 4
      %s31 = int_to_ptr.vmem [resolvable:$true] %s30
      %36 = dma.hbm_to_vmem [thread:$0]  %s1, 18816, %s31, [#allocation6], 192, 192, 12
    $region9: #{tpu_custom_call.1} parent=1 // pred_fallthru
      _
    // Predicated region
    $region10: #{tpu_custom_call.1} parent=1 // pred_check
      _
    $region11: #{tpu_custom_call.1} parent=1 // pred_check_branch
      %38 = sbr.rel (0) target = $region13
    $region12: #{tpu_custom_call.1} parent=1 // pred_region
      _
    $region13: #{tpu_custom_call.1} parent=1 // pred_fallthru
      _
    // Predicated region
    $region14: #{tpu_custom_call.1} parent=1 // pred_check
      _
    $region15: #{tpu_custom_call.1} parent=1 // pred_check_branch
      %40 = sbr.rel (0) target = $region17
    $region16: #{tpu_custom_call.1} parent=1 // pred_region
      %s42 = ssub.s32 3072, 3072
      %43 = vsyncadd [#allocation6], %s42
      %s44 = sshll.u32 [#allocation7], 4
      %s45 = int_to_ptr.vmem [resolvable:$true] %s44
      %50 = dma.hbm_to_vmem [thread:$0]  %s3, 3072, %s45, [#allocation6], 64, 64, 4
    $region17: #{tpu_custom_call.1} parent=1 // pred_fallthru
      _
    // Predicated region
    $region18: #{tpu_custom_call.1} parent=1 // pred_check
      _
    $region19: #{tpu_custom_call.1} parent=1 // pred_check_branch
      %52 = sbr.rel (0) target = $region21
    $region20: #{tpu_custom_call.1} parent=1 // pred_region
      _
    $region21: #{tpu_custom_call.1} parent=1 // pred_fallthru
      _
    // Predicated region
    $region22: #{tpu_custom_call.1} parent=1 // pred_check
      _
    $region23: #{tpu_custom_call.1} parent=1 // pred_check_branch
      %54 = sbr.rel (0) target = $region25
    $region24: #{tpu_custom_call.1} parent=1 // pred_region
      %55 = dma.done [#allocation3], 896
    $region25: #{tpu_custom_call.1} parent=1 // pred_fallthru
      _
    // Predicated region
    $region26: #{tpu_custom_call.1} parent=1 // pred_check
      _
    $region27: #{tpu_custom_call.1} parent=1 // pred_check_branch
      %57 = sbr.rel (0) target = $region29
    $region28: #{tpu_custom_call.1} parent=1 // pred_region
      %58 = dma.done [#allocation6], 18816
    $region29: #{tpu_custom_call.1} parent=1 // pred_fallthru
      _
    // Predicated region
    $region30: #{tpu_custom_call.1} parent=1 // pred_check
      _
    $region31: #{tpu_custom_call.1} parent=1 // pred_check_branch
      %60 = sbr.rel (0) target = $region33
    $region32: #{tpu_custom_call.1} parent=1 // pred_region
      %61 = dma.done [#allocation6], 3072
    $region33: #{tpu_custom_call.1} parent=1 // pred_fallthru
      _
    %v63 = vld [vmem:[#allocation2] sm:$0xff]
    %v64 = vld [vmem:[#allocation2 + $0x8] sm:$0xff]
    %v65 = vld [vmem:[#allocation2 + $0x10] sm:$0xff]
    %v66 = vld [vmem:[#allocation2 + $0x18] sm:$0xf]
    %v67 = vld [vmem:[#allocation2 + $0x1c] sm:$0xff]
    %v68 = vld [vmem:[#allocation2 + $0x24] sm:$0xff]
    %v69 = vld [vmem:[#allocation2 + $0x2c] sm:$0xff]
    %v70 = vld [vmem:[#allocation2 + $0x34] sm:$0xf]
    %v71 = vld [vmem:[#allocation5] sm:$0xff]
    %v72 = vld [vmem:[#allocation5 + $0x8] sm:$0xf]
    %v73 = vld [vmem:[#allocation5 + $0xc] sm:$0xff]
    %v74 = vld [vmem:[#allocation5 + $0x14] sm:$0xf]
    %v75 = vld [vmem:[#allocation5 + $0x18] sm:$0xff]
    %v76 = vld [vmem:[#allocation5 + $0x20] sm:$0xf]
    %v77 = vld [vmem:[#allocation5 + $0x24] sm:$0xff]
    %v78 = vld [vmem:[#allocation5 + $0x2c] sm:$0xf]
    %v79 = vld [vmem:[#allocation5 + $0x30] sm:$0xff]
    %v80 = vld [vmem:[#allocation5 + $0x38] sm:$0xf]
    %v81 = vld [vmem:[#allocation5 + $0x3c] sm:$0xff]
    %v82 = vld [vmem:[#allocation5 + $0x44] sm:$0xf]
    %v83 = vld [vmem:[#allocation5 + $0x48] sm:$0xff]
    %v84 = vld [vmem:[#allocation5 + $0x50] sm:$0xf]
    %v85 = vld [vmem:[#allocation5 + $0x54] sm:$0xff]
    %v86 = vld [vmem:[#allocation5 + $0x5c] sm:$0xf]
    %v87 = vld [vmem:[#allocation5 + $0x60] sm:$0xff]
    %v88 = vld [vmem:[#allocation5 + $0x68] sm:$0xf]
    %v89 = vld [vmem:[#allocation5 + $0x6c] sm:$0xff]
    %v90 = vld [vmem:[#allocation5 + $0x74] sm:$0xf]
    %v91 = vld [vmem:[#allocation5 + $0x78] sm:$0xff]
    %v92 = vld [vmem:[#allocation5 + $0x80] sm:$0xf]
    %v93 = vld [vmem:[#allocation5 + $0x84] sm:$0xff]
    %v94 = vld [vmem:[#allocation5 + $0x8c] sm:$0xf]
    %v95 = vld [vmem:[#allocation5 + $0x90] sm:$0xff]
    %v96 = vld [vmem:[#allocation5 + $0x98] sm:$0xf]
    %v97 = vld [vmem:[#allocation5 + $0x9c] sm:$0xff]
    %v98 = vld [vmem:[#allocation5 + $0xa4] sm:$0xf]
    %v99 = vld [vmem:[#allocation5 + $0xa8] sm:$0xff]
    %v100 = vld [vmem:[#allocation5 + $0xb0] sm:$0xf]
    %v101 = vld [vmem:[#allocation5 + $0xb4] sm:$0xff]
    %v102 = vld [vmem:[#allocation5 + $0xbc] sm:$0xf]
    %v103 = vld [vmem:[#allocation5 + $0xc0] sm:$0xff]
    %v104 = vld [vmem:[#allocation5 + $0xc8] sm:$0xf]
    %v105 = vld [vmem:[#allocation5 + $0xcc] sm:$0xff]
    %v106 = vld [vmem:[#allocation5 + $0xd4] sm:$0xf]
    %v107 = vld [vmem:[#allocation5 + $0xd8] sm:$0xff]
    %v108 = vld [vmem:[#allocation5 + $0xe0] sm:$0xf]
    %v109 = vld [vmem:[#allocation5 + $0xe4] sm:$0xff]
    %v110 = vld [vmem:[#allocation5 + $0xec] sm:$0xf]
    %v111 = vld [vmem:[#allocation5 + $0xf0] sm:$0xff]
    %v112 = vld [vmem:[#allocation5 + $0xf8] sm:$0xf]
    %v113 = vld [vmem:[#allocation5 + $0xfc] sm:$0xff]
    %v114 = vld [vmem:[#allocation5 + $0x104] sm:$0xf]
    %v115 = vld [vmem:[#allocation5 + $0x108] sm:$0xff]
    %v116 = vld [vmem:[#allocation5 + $0x110] sm:$0xf]
    %v117 = vld [vmem:[#allocation5 + $0x114] sm:$0xff]
    %v118 = vld [vmem:[#allocation5 + $0x11c] sm:$0xf]
    %v119 = vld [vmem:[#allocation5 + $0x120] sm:$0xff]
    %v120 = vld [vmem:[#allocation5 + $0x128] sm:$0xf]
    %v121 = vld [vmem:[#allocation5 + $0x12c] sm:$0xff]
    %v122 = vld [vmem:[#allocation5 + $0x134] sm:$0xf]
    %v123 = vld [vmem:[#allocation5 + $0x138] sm:$0xff]
    %v124 = vld [vmem:[#allocation5 + $0x140] sm:$0xf]
    %v125 = vld [vmem:[#allocation5 + $0x144] sm:$0xff]
    %v126 = vld [vmem:[#allocation5 + $0x14c] sm:$0xf]
    %v127 = vld [vmem:[#allocation5 + $0x150] sm:$0xff]
    %v128 = vld [vmem:[#allocation5 + $0x158] sm:$0xf]
    %v129 = vld [vmem:[#allocation5 + $0x15c] sm:$0xff]
    %v130 = vld [vmem:[#allocation5 + $0x164] sm:$0xf]
    %v131 = vld [vmem:[#allocation5 + $0x168] sm:$0xff]
    %v132 = vld [vmem:[#allocation5 + $0x170] sm:$0xf]
    %v133 = vld [vmem:[#allocation5 + $0x174] sm:$0xff]
    %v134 = vld [vmem:[#allocation5 + $0x17c] sm:$0xf]
    %v135 = vld [vmem:[#allocation5 + $0x180] sm:$0xff]
    %v136 = vld [vmem:[#allocation5 + $0x188] sm:$0xf]
    %v137 = vld [vmem:[#allocation5 + $0x18c] sm:$0xff]
    %v138 = vld [vmem:[#allocation5 + $0x194] sm:$0xf]
    %v139 = vld [vmem:[#allocation5 + $0x198] sm:$0xff]
    %v140 = vld [vmem:[#allocation5 + $0x1a0] sm:$0xf]
    %v141 = vld [vmem:[#allocation5 + $0x1a4] sm:$0xff]
    %v142 = vld [vmem:[#allocation5 + $0x1ac] sm:$0xf]
    %v143 = vld [vmem:[#allocation5 + $0x1b0] sm:$0xff]
    %v144 = vld [vmem:[#allocation5 + $0x1b8] sm:$0xf]
    %v145 = vld [vmem:[#allocation5 + $0x1bc] sm:$0xff]
    %v146 = vld [vmem:[#allocation5 + $0x1c4] sm:$0xf]
    %v147 = vld [vmem:[#allocation5 + $0x1c8] sm:$0xff]
    %v148 = vld [vmem:[#allocation5 + $0x1d0] sm:$0xf]
    %v149 = vld [vmem:[#allocation5 + $0x1d4] sm:$0xff]
    %v150 = vld [vmem:[#allocation5 + $0x1dc] sm:$0xf]
    %v151 = vld [vmem:[#allocation5 + $0x1e0] sm:$0xff]
    %v152 = vld [vmem:[#allocation5 + $0x1e8] sm:$0xf]
    %v153 = vld [vmem:[#allocation5 + $0x1ec] sm:$0xff]
    %v154 = vld [vmem:[#allocation5 + $0x1f4] sm:$0xf]
    %v155 = vld [vmem:[#allocation5 + $0x1f8] sm:$0xff]
    %v156 = vld [vmem:[#allocation5 + $0x200] sm:$0xf]
    %v157 = vld [vmem:[#allocation5 + $0x204] sm:$0xff]
    %v158 = vld [vmem:[#allocation5 + $0x20c] sm:$0xf]
    %v159 = vld [vmem:[#allocation5 + $0x210] sm:$0xff]
    %v160 = vld [vmem:[#allocation5 + $0x218] sm:$0xf]
    %v161 = vld [vmem:[#allocation5 + $0x21c] sm:$0xff]
    %v162 = vld [vmem:[#allocation5 + $0x224] sm:$0xf]
    %v163 = vld [vmem:[#allocation5 + $0x228] sm:$0xff]
    %v164 = vld [vmem:[#allocation5 + $0x230] sm:$0xf]
    %v165 = vld [vmem:[#allocation5 + $0x234] sm:$0xff]
    %v166 = vld [vmem:[#allocation5 + $0x23c] sm:$0xf]
    %v167 = vld [vmem:[#allocation5 + $0x240] sm:$0xff]
    %v168 = vld [vmem:[#allocation5 + $0x248] sm:$0xf]
    %v169 = vld [vmem:[#allocation5 + $0x24c] sm:$0xff]
    %v170 = vld [vmem:[#allocation5 + $0x254] sm:$0xf]
    %v171 = vld [vmem:[#allocation5 + $0x258] sm:$0xff]
    %v172 = vld [vmem:[#allocation5 + $0x260] sm:$0xf]
    %v173 = vld [vmem:[#allocation5 + $0x264] sm:$0xff]
    %v174 = vld [vmem:[#allocation5 + $0x26c] sm:$0xf]
    %v175 = vld [vmem:[#allocation5 + $0x270] sm:$0xff]
    %v176 = vld [vmem:[#allocation5 + $0x278] sm:$0xf]
    %v177 = vld [vmem:[#allocation5 + $0x27c] sm:$0xff]
    %v178 = vld [vmem:[#allocation5 + $0x284] sm:$0xf]
    %v179 = vld [vmem:[#allocation5 + $0x288] sm:$0xff]
    %v180 = vld [vmem:[#allocation5 + $0x290] sm:$0xf]
    %v181 = vld [vmem:[#allocation5 + $0x294] sm:$0xff]
    %v182 = vld [vmem:[#allocation5 + $0x29c] sm:$0xf]
    %v183 = vld [vmem:[#allocation5 + $0x2a0] sm:$0xff]
    %v184 = vld [vmem:[#allocation5 + $0x2a8] sm:$0xf]
    %v185 = vld [vmem:[#allocation5 + $0x2ac] sm:$0xff]
    %v186 = vld [vmem:[#allocation5 + $0x2b4] sm:$0xf]
    %v187 = vld [vmem:[#allocation5 + $0x2b8] sm:$0xff]
    %v188 = vld [vmem:[#allocation5 + $0x2c0] sm:$0xf]
    %v189 = vld [vmem:[#allocation5 + $0x2c4] sm:$0xff]
    %v190 = vld [vmem:[#allocation5 + $0x2cc] sm:$0xf]
    %v191 = vld [vmem:[#allocation5 + $0x2d0] sm:$0xff]
    %v192 = vld [vmem:[#allocation5 + $0x2d8] sm:$0xf]
    %v193 = vld [vmem:[#allocation5 + $0x2dc] sm:$0xff]
    %v194 = vld [vmem:[#allocation5 + $0x2e4] sm:$0xf]
    %v195 = vld [vmem:[#allocation5 + $0x2e8] sm:$0xff]
    %v196 = vld [vmem:[#allocation5 + $0x2f0] sm:$0xf]
    %v197 = vld [vmem:[#allocation5 + $0x2f4] sm:$0xff]
    %v198 = vld [vmem:[#allocation5 + $0x2fc] sm:$0xf]
    %v199 = vld [vmem:[#allocation5 + $0x300] sm:$0xff]
    %v200 = vld [vmem:[#allocation5 + $0x308] sm:$0xf]
    %v201 = vld [vmem:[#allocation5 + $0x30c] sm:$0xff]
    %v202 = vld [vmem:[#allocation5 + $0x314] sm:$0xf]
    %v203 = vld [vmem:[#allocation5 + $0x318] sm:$0xff]
    %v204 = vld [vmem:[#allocation5 + $0x320] sm:$0xf]
    %v205 = vld [vmem:[#allocation5 + $0x324] sm:$0xff]
    %v206 = vld [vmem:[#allocation5 + $0x32c] sm:$0xf]
    %v207 = vld [vmem:[#allocation5 + $0x330] sm:$0xff]
    %v208 = vld [vmem:[#allocation5 + $0x338] sm:$0xf]
    %v209 = vld [vmem:[#allocation5 + $0x33c] sm:$0xff]
    %v210 = vld [vmem:[#allocation5 + $0x344] sm:$0xf]
    %v211 = vld [vmem:[#allocation5 + $0x348] sm:$0xff]
    %v212 = vld [vmem:[#allocation5 + $0x350] sm:$0xf]
    %v213 = vld [vmem:[#allocation5 + $0x354] sm:$0xff]
    %v214 = vld [vmem:[#allocation5 + $0x35c] sm:$0xf]
    %v215 = vld [vmem:[#allocation5 + $0x360] sm:$0xff]
    %v216 = vld [vmem:[#allocation5 + $0x368] sm:$0xf]
    %v217 = vld [vmem:[#allocation5 + $0x36c] sm:$0xff]
    %v218 = vld [vmem:[#allocation5 + $0x374] sm:$0xf]
    %v219 = vld [vmem:[#allocation5 + $0x378] sm:$0xff]
    %v220 = vld [vmem:[#allocation5 + $0x380] sm:$0xf]
    %v221 = vld [vmem:[#allocation5 + $0x384] sm:$0xff]
    %v222 = vld [vmem:[#allocation5 + $0x38c] sm:$0xf]
    %v223 = vld [vmem:[#allocation5 + $0x390] sm:$0xff]
    %v224 = vld [vmem:[#allocation5 + $0x398] sm:$0xf]
    %v225 = vld [vmem:[#allocation5 + $0x39c] sm:$0xff]
    %v226 = vld [vmem:[#allocation5 + $0x3a4] sm:$0xf]
    %v227 = vld [vmem:[#allocation5 + $0x3a8] sm:$0xff]
    %v228 = vld [vmem:[#allocation5 + $0x3b0] sm:$0xf]
    %v229 = vld [vmem:[#allocation5 + $0x3b4] sm:$0xff]
    %v230 = vld [vmem:[#allocation5 + $0x3bc] sm:$0xf]
    %v231 = vld [vmem:[#allocation5 + $0x3c0] sm:$0xff]
    %v232 = vld [vmem:[#allocation5 + $0x3c8] sm:$0xf]
    %v233 = vld [vmem:[#allocation5 + $0x3cc] sm:$0xff]
    %v234 = vld [vmem:[#allocation5 + $0x3d4] sm:$0xf]
    %v235 = vld [vmem:[#allocation5 + $0x3d8] sm:$0xff]
    %v236 = vld [vmem:[#allocation5 + $0x3e0] sm:$0xf]
    %v237 = vld [vmem:[#allocation5 + $0x3e4] sm:$0xff]
    %v238 = vld [vmem:[#allocation5 + $0x3ec] sm:$0xf]
    %v239 = vld [vmem:[#allocation5 + $0x3f0] sm:$0xff]
    %v240 = vld [vmem:[#allocation5 + $0x3f8] sm:$0xf]
    %v241 = vld [vmem:[#allocation5 + $0x3fc] sm:$0xff]
    %v242 = vld [vmem:[#allocation5 + $0x404] sm:$0xf]
    %v243 = vld [vmem:[#allocation5 + $0x408] sm:$0xff]
    %v244 = vld [vmem:[#allocation5 + $0x410] sm:$0xf]
    %v245 = vld [vmem:[#allocation5 + $0x414] sm:$0xff]
    %v246 = vld [vmem:[#allocation5 + $0x41c] sm:$0xf]
    %v247 = vld [vmem:[#allocation5 + $0x420] sm:$0xff]
    %v248 = vld [vmem:[#allocation5 + $0x428] sm:$0xf]
    %v249 = vld [vmem:[#allocation5 + $0x42c] sm:$0xff]
    %v250 = vld [vmem:[#allocation5 + $0x434] sm:$0xf]
    %v251 = vld [vmem:[#allocation5 + $0x438] sm:$0xff]
    %v252 = vld [vmem:[#allocation5 + $0x440] sm:$0xf]
    %v253 = vld [vmem:[#allocation5 + $0x444] sm:$0xff]
    %v254 = vld [vmem:[#allocation5 + $0x44c] sm:$0xf]
    %v255 = vld [vmem:[#allocation5 + $0x450] sm:$0xff]
    %v256 = vld [vmem:[#allocation5 + $0x458] sm:$0xf]
    %v257 = vld [vmem:[#allocation5 + $0x45c] sm:$0xff]
    %v258 = vld [vmem:[#allocation5 + $0x464] sm:$0xf]
    %v259 = vld [vmem:[#allocation5 + $0x468] sm:$0xff]
    %v260 = vld [vmem:[#allocation5 + $0x470] sm:$0xf]
    %v261 = vld [vmem:[#allocation5 + $0x474] sm:$0xff]
    %v262 = vld [vmem:[#allocation5 + $0x47c] sm:$0xf]
    %v263 = vld [vmem:[#allocation5 + $0x480] sm:$0xff]
    %v264 = vld [vmem:[#allocation5 + $0x488] sm:$0xf]
    %v265 = vld [vmem:[#allocation5 + $0x48c] sm:$0xff]
    %v266 = vld [vmem:[#allocation5 + $0x494] sm:$0xf]
    %v267 = vld [vmem:[%s2] sm:$0x7]
    %v269 = vlaneseq
    %v270 = vshrl.u32 %v269, 7
    %v271 = vsub.s32 0, %v270
    %v272 = vrot.slane %v267, %v271
    %v273 = vlaneseq
    %v274 = vshrl.u32 %v273, 7
    %v275 = vsub.s32 1, %v274
    %v276 = vrot.slane %v267, %v275
    %v277 = vlaneseq
    %v278 = vshrl.u32 %v277, 7
    %v279 = vsub.s32 2, %v278
    %v280 = vrot.slane %v267, %v279
    %v292 = vunpack.c.l.b16 %v63
    %v293 = vunpack.c.h.b16 %v63
    %v294 = vunpack.c.l.b16 %v64
    %v295 = vunpack.c.h.b16 %v64
    %v296 = vunpack.c.l.b16 %v65
    %v297 = vunpack.c.h.b16 %v65
    %v298 = vunpack.c.l.b16 %v66
    %v299 = vunpack.c.l.b16 %v67
    %v300 = vunpack.c.h.b16 %v67
    %v301 = vunpack.c.l.b16 %v68
    %v302 = vunpack.c.h.b16 %v68
    %v303 = vunpack.c.l.b16 %v69
    %v304 = vunpack.c.h.b16 %v69
    %v305 = vunpack.c.l.b16 %v70
    %v306 = vpack.c.b16 %v299, %v292
    %v307 = vpack.c.b16 %v300, %v293
    %v308 = vpack.c.b16 %v301, %v294
    %v309 = vpack.c.b16 %v302, %v295
    %v310 = vpack.c.b16 %v303, %v296
    %v311 = vpack.c.b16 %v304, %v297
    %v312 = vpack.c.b16 %v305, %v298
    %v515 = vunpack.c.l.b16 %v71
    %v516 = vunpack.c.h.b16 %v71
    %v517 = vunpack.c.l.b16 %v72
    %v518 = vunpack.c.l.b16 %v73
    %v519 = vunpack.c.h.b16 %v73
    %v520 = vunpack.c.l.b16 %v74
    %v521 = vunpack.c.l.b16 %v75
    %v522 = vunpack.c.h.b16 %v75
    %v523 = vunpack.c.l.b16 %v76
    %v524 = vunpack.c.l.b16 %v77
    %v525 = vunpack.c.h.b16 %v77
    %v526 = vunpack.c.l.b16 %v78
    %v527 = vunpack.c.l.b16 %v79
    %v528 = vunpack.c.h.b16 %v79
    %v529 = vunpack.c.l.b16 %v80
    %v530 = vunpack.c.l.b16 %v81
    %v531 = vunpack.c.h.b16 %v81
    %v532 = vunpack.c.l.b16 %v82
    %v533 = vunpack.c.l.b16 %v83
    %v534 = vunpack.c.h.b16 %v83
    %v535 = vunpack.c.l.b16 %v84
    %v536 = vunpack.c.l.b16 %v85
    %v537 = vunpack.c.h.b16 %v85
    %v538 = vunpack.c.l.b16 %v86
    %v539 = vunpack.c.l.b16 %v87
    %v540 = vunpack.c.h.b16 %v87
    %v541 = vunpack.c.l.b16 %v88
    %v542 = vunpack.c.l.b16 %v89
    %v543 = vunpack.c.h.b16 %v89
    %v544 = vunpack.c.l.b16 %v90
    %v545 = vunpack.c.l.b16 %v91
    %v546 = vunpack.c.h.b16 %v91
    %v547 = vunpack.c.l.b16 %v92
    %v548 = vunpack.c.l.b16 %v93
    %v549 = vunpack.c.h.b16 %v93
    %v550 = vunpack.c.l.b16 %v94
    %v551 = vunpack.c.l.b16 %v95
    %v552 = vunpack.c.h.b16 %v95
    %v553 = vunpack.c.l.b16 %v96
    %v554 = vunpack.c.l.b16 %v97
    %v555 = vunpack.c.h.b16 %v97
    %v556 = vunpack.c.l.b16 %v98
    %v557 = vunpack.c.l.b16 %v99
    %v558 = vunpack.c.h.b16 %v99
    %v559 = vunpack.c.l.b16 %v100
    %v560 = vunpack.c.l.b16 %v101
    %v561 = vunpack.c.h.b16 %v101
    %v562 = vunpack.c.l.b16 %v102
    %v563 = vunpack.c.l.b16 %v103
    %v564 = vunpack.c.h.b16 %v103
    %v565 = vunpack.c.l.b16 %v104
    %v566 = vunpack.c.l.b16 %v105
    %v567 = vunpack.c.h.b16 %v105
    %v568 = vunpack.c.l.b16 %v106
    %v569 = vunpack.c.l.b16 %v107
    %v570 = vunpack.c.h.b16 %v107
    %v571 = vunpack.c.l.b16 %v108
    %v572 = vunpack.c.l.b16 %v109
    %v573 = vunpack.c.h.b16 %v109
    %v574 = vunpack.c.l.b16 %v110
    %v575 = vunpack.c.l.b16 %v111
    %v576 = vunpack.c.h.b16 %v111
    %v577 = vunpack.c.l.b16 %v112
    %v578 = vunpack.c.l.b16 %v113
    %v579 = vunpack.c.h.b16 %v113
    %v580 = vunpack.c.l.b16 %v114
    %v581 = vunpack.c.l.b16 %v115
    %v582 = vunpack.c.h.b16 %v115
    %v583 = vunpack.c.l.b16 %v116
    %v584 = vunpack.c.l.b16 %v117
    %v585 = vunpack.c.h.b16 %v117
    %v586 = vunpack.c.l.b16 %v118
    %v587 = vunpack.c.l.b16 %v119
    %v588 = vunpack.c.h.b16 %v119
    %v589 = vunpack.c.l.b16 %v120
    %v590 = vunpack.c.l.b16 %v121
    %v591 = vunpack.c.h.b16 %v121
    %v592 = vunpack.c.l.b16 %v122
    %v593 = vunpack.c.l.b16 %v123
    %v594 = vunpack.c.h.b16 %v123
    %v595 = vunpack.c.l.b16 %v124
    %v596 = vunpack.c.l.b16 %v125
    %v597 = vunpack.c.h.b16 %v125
    %v598 = vunpack.c.l.b16 %v126
    %v599 = vunpack.c.l.b16 %v127
    %v600 = vunpack.c.h.b16 %v127
    %v601 = vunpack.c.l.b16 %v128
    %v602 = vunpack.c.l.b16 %v129
    %v603 = vunpack.c.h.b16 %v129
    %v604 = vunpack.c.l.b16 %v130
    %v605 = vunpack.c.l.b16 %v131
    %v606 = vunpack.c.h.b16 %v131
    %v607 = vunpack.c.l.b16 %v132
    %v608 = vunpack.c.l.b16 %v133
    %v609 = vunpack.c.h.b16 %v133
    %v610 = vunpack.c.l.b16 %v134
    %v611 = vunpack.c.l.b16 %v135
    %v612 = vunpack.c.h.b16 %v135
    %v613 = vunpack.c.l.b16 %v136
    %v614 = vunpack.c.l.b16 %v137
    %v615 = vunpack.c.h.b16 %v137
    %v616 = vunpack.c.l.b16 %v138
    %v617 = vunpack.c.l.b16 %v139
    %v618 = vunpack.c.h.b16 %v139
    %v619 = vunpack.c.l.b16 %v140
    %v620 = vunpack.c.l.b16 %v141
    %v621 = vunpack.c.h.b16 %v141
    %v622 = vunpack.c.l.b16 %v142
    %v623 = vunpack.c.l.b16 %v143
    %v624 = vunpack.c.h.b16 %v143
    %v625 = vunpack.c.l.b16 %v144
    %v626 = vunpack.c.l.b16 %v145
    %v627 = vunpack.c.h.b16 %v145
    %v628 = vunpack.c.l.b16 %v146
    %v629 = vunpack.c.l.b16 %v147
    %v630 = vunpack.c.h.b16 %v147
    %v631 = vunpack.c.l.b16 %v148
    %v632 = vunpack.c.l.b16 %v149
    %v633 = vunpack.c.h.b16 %v149
    %v634 = vunpack.c.l.b16 %v150
    %v635 = vunpack.c.l.b16 %v151
    %v636 = vunpack.c.h.b16 %v151
    %v637 = vunpack.c.l.b16 %v152
    %v638 = vunpack.c.l.b16 %v153
    %v639 = vunpack.c.h.b16 %v153
    %v640 = vunpack.c.l.b16 %v154
    %v641 = vunpack.c.l.b16 %v155
    %v642 = vunpack.c.h.b16 %v155
    %v643 = vunpack.c.l.b16 %v156
    %v644 = vunpack.c.l.b16 %v157
    %v645 = vunpack.c.h.b16 %v157
    %v646 = vunpack.c.l.b16 %v158
    %v647 = vunpack.c.l.b16 %v159
    %v648 = vunpack.c.h.b16 %v159
    %v649 = vunpack.c.l.b16 %v160
    %v650 = vunpack.c.l.b16 %v161
    %v651 = vunpack.c.h.b16 %v161
    %v652 = vunpack.c.l.b16 %v162
    %v653 = vunpack.c.l.b16 %v163
    %v654 = vunpack.c.h.b16 %v163
    %v655 = vunpack.c.l.b16 %v164
    %v656 = vunpack.c.l.b16 %v165
    %v657 = vunpack.c.h.b16 %v165
    %v658 = vunpack.c.l.b16 %v166
    %v659 = vunpack.c.l.b16 %v167
    %v660 = vunpack.c.h.b16 %v167
    %v661 = vunpack.c.l.b16 %v168
    %v662 = vunpack.c.l.b16 %v169
    %v663 = vunpack.c.h.b16 %v169
    %v664 = vunpack.c.l.b16 %v170
    %v665 = vunpack.c.l.b16 %v171
    %v666 = vunpack.c.h.b16 %v171
    %v667 = vunpack.c.l.b16 %v172
    %v668 = vunpack.c.l.b16 %v173
    %v669 = vunpack.c.h.b16 %v173
    %v670 = vunpack.c.l.b16 %v174
    %v671 = vunpack.c.l.b16 %v175
    %v672 = vunpack.c.h.b16 %v175
    %v673 = vunpack.c.l.b16 %v176
    %v674 = vunpack.c.l.b16 %v177
    %v675 = vunpack.c.h.b16 %v177
    %v676 = vunpack.c.l.b16 %v178
    %v677 = vunpack.c.l.b16 %v179
    %v678 = vunpack.c.h.b16 %v179
    %v679 = vunpack.c.l.b16 %v180
    %v680 = vunpack.c.l.b16 %v181
    %v681 = vunpack.c.h.b16 %v181
    %v682 = vunpack.c.l.b16 %v182
    %v683 = vunpack.c.l.b16 %v183
    %v684 = vunpack.c.h.b16 %v183
    %v685 = vunpack.c.l.b16 %v184
    %v686 = vunpack.c.l.b16 %v185
    %v687 = vunpack.c.h.b16 %v185
    %v688 = vunpack.c.l.b16 %v186
    %v689 = vunpack.c.l.b16 %v187
    %v690 = vunpack.c.h.b16 %v187
    %v691 = vunpack.c.l.b16 %v188
    %v692 = vunpack.c.l.b16 %v189
    %v693 = vunpack.c.h.b16 %v189
    %v694 = vunpack.c.l.b16 %v190
    %v695 = vunpack.c.l.b16 %v191
    %v696 = vunpack.c.h.b16 %v191
    %v697 = vunpack.c.l.b16 %v192
    %v698 = vunpack.c.l.b16 %v193
    %v699 = vunpack.c.h.b16 %v193
    %v700 = vunpack.c.l.b16 %v194
    %v701 = vunpack.c.l.b16 %v195
    %v702 = vunpack.c.h.b16 %v195
    %v703 = vunpack.c.l.b16 %v196
    %v704 = vunpack.c.l.b16 %v197
    %v705 = vunpack.c.h.b16 %v197
    %v706 = vunpack.c.l.b16 %v198
    %v707 = vunpack.c.l.b16 %v199
    %v708 = vunpack.c.h.b16 %v199
    %v709 = vunpack.c.l.b16 %v200
    %v710 = vunpack.c.l.b16 %v201
    %v711 = vunpack.c.h.b16 %v201
    %v712 = vunpack.c.l.b16 %v202
    %v713 = vunpack.c.l.b16 %v203
    %v714 = vunpack.c.h.b16 %v203
    %v715 = vunpack.c.l.b16 %v204
    %v716 = vunpack.c.l.b16 %v205
    %v717 = vunpack.c.h.b16 %v205
    %v718 = vunpack.c.l.b16 %v206
    %v719 = vunpack.c.l.b16 %v207
    %v720 = vunpack.c.h.b16 %v207
    %v721 = vunpack.c.l.b16 %v208
    %v722 = vunpack.c.l.b16 %v209
    %v723 = vunpack.c.h.b16 %v209
    %v724 = vunpack.c.l.b16 %v210
    %v725 = vunpack.c.l.b16 %v211
    %v726 = vunpack.c.h.b16 %v211
    %v727 = vunpack.c.l.b16 %v212
    %v728 = vunpack.c.l.b16 %v213
    %v729 = vunpack.c.h.b16 %v213
    %v730 = vunpack.c.l.b16 %v214
    %v731 = vunpack.c.l.b16 %v215
    %v732 = vunpack.c.h.b16 %v215
    %v733 = vunpack.c.l.b16 %v216
    %v734 = vunpack.c.l.b16 %v217
    %v735 = vunpack.c.h.b16 %v217
    %v736 = vunpack.c.l.b16 %v218
    %v737 = vunpack.c.l.b16 %v219
    %v738 = vunpack.c.h.b16 %v219
    %v739 = vunpack.c.l.b16 %v220
    %v740 = vunpack.c.l.b16 %v221
    %v741 = vunpack.c.h.b16 %v221
    %v742 = vunpack.c.l.b16 %v222
    %v743 = vunpack.c.l.b16 %v223
    %v744 = vunpack.c.h.b16 %v223
    %v745 = vunpack.c.l.b16 %v224
    %v746 = vunpack.c.l.b16 %v225
    %v747 = vunpack.c.h.b16 %v225
    %v748 = vunpack.c.l.b16 %v226
    %v749 = vunpack.c.l.b16 %v227
    %v750 = vunpack.c.h.b16 %v227
    %v751 = vunpack.c.l.b16 %v228
    %v752 = vunpack.c.l.b16 %v229
    %v753 = vunpack.c.h.b16 %v229
    %v754 = vunpack.c.l.b16 %v230
    %v755 = vunpack.c.l.b16 %v231
    %v756 = vunpack.c.h.b16 %v231
    %v757 = vunpack.c.l.b16 %v232
    %v758 = vunpack.c.l.b16 %v233
    %v759 = vunpack.c.h.b16 %v233
    %v760 = vunpack.c.l.b16 %v234
    %v761 = vunpack.c.l.b16 %v235
    %v762 = vunpack.c.h.b16 %v235
    %v763 = vunpack.c.l.b16 %v236
    %v764 = vunpack.c.l.b16 %v237
    %v765 = vunpack.c.h.b16 %v237
    %v766 = vunpack.c.l.b16 %v238
    %v767 = vunpack.c.l.b16 %v239
    %v768 = vunpack.c.h.b16 %v239
    %v769 = vunpack.c.l.b16 %v240
    %v770 = vunpack.c.l.b16 %v241
    %v771 = vunpack.c.h.b16 %v241
    %v772 = vunpack.c.l.b16 %v242
    %v773 = vunpack.c.l.b16 %v243
    %v774 = vunpack.c.h.b16 %v243
    %v775 = vunpack.c.l.b16 %v244
    %v776 = vunpack.c.l.b16 %v245
    %v777 = vunpack.c.h.b16 %v245
    %v778 = vunpack.c.l.b16 %v246
    %v779 = vunpack.c.l.b16 %v247
    %v780 = vunpack.c.h.b16 %v247
    %v781 = vunpack.c.l.b16 %v248
    %v782 = vunpack.c.l.b16 %v249
    %v783 = vunpack.c.h.b16 %v249
    %v784 = vunpack.c.l.b16 %v250
    %v785 = vunpack.c.l.b16 %v251
    %v786 = vunpack.c.h.b16 %v251
    %v787 = vunpack.c.l.b16 %v252
    %v788 = vunpack.c.l.b16 %v253
    %v789 = vunpack.c.h.b16 %v253
    %v790 = vunpack.c.l.b16 %v254
    %v791 = vunpack.c.l.b16 %v255
    %v792 = vunpack.c.h.b16 %v255
    %v793 = vunpack.c.l.b16 %v256
    %v794 = vunpack.c.l.b16 %v257
    %v795 = vunpack.c.h.b16 %v257
    %v796 = vunpack.c.l.b16 %v258
    %v797 = vunpack.c.l.b16 %v259
    %v798 = vunpack.c.h.b16 %v259
    %v799 = vunpack.c.l.b16 %v260
    %v800 = vunpack.c.l.b16 %v261
    %v801 = vunpack.c.h.b16 %v261
    %v802 = vunpack.c.l.b16 %v262
    %v803 = vunpack.c.l.b16 %v263
    %v804 = vunpack.c.h.b16 %v263
    %v805 = vunpack.c.l.b16 %v264
    %v806 = vunpack.c.l.b16 %v265
    %v807 = vunpack.c.h.b16 %v265
    %v808 = vunpack.c.l.b16 %v266
    %v809 = vpack.c.b16 %v518, %v515
    %v810 = vpack.c.b16 %v519, %v516
    %v811 = vpack.c.b16 %v520, %v517
    %v812 = vpack.c.b16 %v524, %v521
    %v813 = vpack.c.b16 %v525, %v522
    %v814 = vpack.c.b16 %v526, %v523
    %v815 = vpack.c.b16 %v530, %v527
    %v816 = vpack.c.b16 %v531, %v528
    %v817 = vpack.c.b16 %v532, %v529
    %v818 = vpack.c.b16 %v536, %v533
    %v819 = vpack.c.b16 %v537, %v534
    %v820 = vpack.c.b16 %v538, %v535
    %v821 = vpack.c.b16 %v542, %v539
    %v822 = vpack.c.b16 %v543, %v540
    %v823 = vpack.c.b16 %v544, %v541
    %v824 = vpack.c.b16 %v548, %v545
    %v825 = vpack.c.b16 %v549, %v546
    %v826 = vpack.c.b16 %v550, %v547
    %v827 = vpack.c.b16 %v554, %v551
    %v828 = vpack.c.b16 %v555, %v552
    %v829 = vpack.c.b16 %v556, %v553
    %v830 = vpack.c.b16 %v560, %v557
    %v831 = vpack.c.b16 %v561, %v558
    %v832 = vpack.c.b16 %v562, %v559
    %v833 = vpack.c.b16 %v566, %v563
    %v834 = vpack.c.b16 %v567, %v564
    %v835 = vpack.c.b16 %v568, %v565
    %v836 = vpack.c.b16 %v572, %v569
    %v837 = vpack.c.b16 %v573, %v570
    %v838 = vpack.c.b16 %v574, %v571
    %v839 = vpack.c.b16 %v578, %v575
    %v840 = vpack.c.b16 %v579, %v576
    %v841 = vpack.c.b16 %v580, %v577
    %v842 = vpack.c.b16 %v584, %v581
    %v843 = vpack.c.b16 %v585, %v582
    %v844 = vpack.c.b16 %v586, %v583
    %v845 = vpack.c.b16 %v590, %v587
    %v846 = vpack.c.b16 %v591, %v588
    %v847 = vpack.c.b16 %v592, %v589
    %v848 = vpack.c.b16 %v596, %v593
    %v849 = vpack.c.b16 %v597, %v594
    %v850 = vpack.c.b16 %v598, %v595
    %v851 = vpack.c.b16 %v602, %v599
    %v852 = vpack.c.b16 %v603, %v600
    %v853 = vpack.c.b16 %v604, %v601
    %v854 = vpack.c.b16 %v608, %v605
    %v855 = vpack.c.b16 %v609, %v606
    %v856 = vpack.c.b16 %v610, %v607
    %v857 = vpack.c.b16 %v614, %v611
    %v858 = vpack.c.b16 %v615, %v612
    %v859 = vpack.c.b16 %v616, %v613
    %v860 = vpack.c.b16 %v620, %v617
    %v861 = vpack.c.b16 %v621, %v618
    %v862 = vpack.c.b16 %v622, %v619
    %v863 = vpack.c.b16 %v626, %v623
    %v864 = vpack.c.b16 %v627, %v624
    %v865 = vpack.c.b16 %v628, %v625
    %v866 = vpack.c.b16 %v632, %v629
    %v867 = vpack.c.b16 %v633, %v630
    %v868 = vpack.c.b16 %v634, %v631
    %v869 = vpack.c.b16 %v638, %v635
    %v870 = vpack.c.b16 %v639, %v636
    %v871 = vpack.c.b16 %v640, %v637
    %v872 = vpack.c.b16 %v644, %v641
    %v873 = vpack.c.b16 %v645, %v642
    %v874 = vpack.c.b16 %v646, %v643
    %v875 = vpack.c.b16 %v650, %v647
    %v876 = vpack.c.b16 %v651, %v648
    %v877 = vpack.c.b16 %v652, %v649
    %v878 = vpack.c.b16 %v656, %v653
    %v879 = vpack.c.b16 %v657, %v654
    %v880 = vpack.c.b16 %v658, %v655
    %v881 = vpack.c.b16 %v662, %v659
    %v882 = vpack.c.b16 %v663, %v660
    %v883 = vpack.c.b16 %v664, %v661
    %v884 = vpack.c.b16 %v668, %v665
    %v885 = vpack.c.b16 %v669, %v666
    %v886 = vpack.c.b16 %v670, %v667
    %v887 = vpack.c.b16 %v674, %v671
    %v888 = vpack.c.b16 %v675, %v672
    %v889 = vpack.c.b16 %v676, %v673
    %v890 = vpack.c.b16 %v680, %v677
    %v891 = vpack.c.b16 %v681, %v678
    %v892 = vpack.c.b16 %v682, %v679
    %v893 = vpack.c.b16 %v686, %v683
    %v894 = vpack.c.b16 %v687, %v684
    %v895 = vpack.c.b16 %v688, %v685
    %v896 = vpack.c.b16 %v692, %v689
    %v897 = vpack.c.b16 %v693, %v690
    %v898 = vpack.c.b16 %v694, %v691
    %v899 = vpack.c.b16 %v698, %v695
    %v900 = vpack.c.b16 %v699, %v696
    %v901 = vpack.c.b16 %v700, %v697
    %v902 = vpack.c.b16 %v704, %v701
    %v903 = vpack.c.b16 %v705, %v702
    %v904 = vpack.c.b16 %v706, %v703
    %v905 = vpack.c.b16 %v710, %v707
    %v906 = vpack.c.b16 %v711, %v708
    %v907 = vpack.c.b16 %v712, %v709
    %v908 = vpack.c.b16 %v716, %v713
    %v909 = vpack.c.b16 %v717, %v714
    %v910 = vpack.c.b16 %v718, %v715
    %v911 = vpack.c.b16 %v722, %v719
    %v912 = vpack.c.b16 %v723, %v720
    %v913 = vpack.c.b16 %v724, %v721
    %v914 = vpack.c.b16 %v728, %v725
    %v915 = vpack.c.b16 %v729, %v726
    %v916 = vpack.c.b16 %v730, %v727
    %v917 = vpack.c.b16 %v734, %v731
    %v918 = vpack.c.b16 %v735, %v732
    %v919 = vpack.c.b16 %v736, %v733
    %v920 = vpack.c.b16 %v740, %v737
    %v921 = vpack.c.b16 %v741, %v738
    %v922 = vpack.c.b16 %v742, %v739
    %v923 = vpack.c.b16 %v746, %v743
    %v924 = vpack.c.b16 %v747, %v744
    %v925 = vpack.c.b16 %v748, %v745
    %v926 = vpack.c.b16 %v752, %v749
    %v927 = vpack.c.b16 %v753, %v750
    %v928 = vpack.c.b16 %v754, %v751
    %v929 = vpack.c.b16 %v758, %v755
    %v930 = vpack.c.b16 %v759, %v756
    %v931 = vpack.c.b16 %v760, %v757
    %v932 = vpack.c.b16 %v764, %v761
    %v933 = vpack.c.b16 %v765, %v762
    %v934 = vpack.c.b16 %v766, %v763
    %v935 = vpack.c.b16 %v770, %v767
    %v936 = vpack.c.b16 %v771, %v768
    %v937 = vpack.c.b16 %v772, %v769
    %v938 = vpack.c.b16 %v776, %v773
    %v939 = vpack.c.b16 %v777, %v774
    %v940 = vpack.c.b16 %v778, %v775
    %v941 = vpack.c.b16 %v782, %v779
    %v942 = vpack.c.b16 %v783, %v780
    %v943 = vpack.c.b16 %v784, %v781
    %v944 = vpack.c.b16 %v788, %v785
    %v945 = vpack.c.b16 %v789, %v786
    %v946 = vpack.c.b16 %v790, %v787
    %v947 = vpack.c.b16 %v794, %v791
    %v948 = vpack.c.b16 %v795, %v792
    %v949 = vpack.c.b16 %v796, %v793
    %v950 = vpack.c.b16 %v800, %v797
    %v951 = vpack.c.b16 %v801, %v798
    %v952 = vpack.c.b16 %v802, %v799
    %v953 = vpack.c.b16 %v806, %v803
    %v954 = vpack.c.b16 %v807, %v804
    %v955 = vpack.c.b16 %v808, %v805
    %vm1103 = vcmask 130048
    %v1105 = vsel %vm1103, %v312, 0
    %1107 = vmatprep.subr.bf16.mxu0 %v831
    %1108 = vmatpush1.bf16.msra.mxu0 %v830
    %1109 = vmatprep.subr.bf16.mxu0 %v828
    %1110 = vmatpush1.bf16.msra.mxu0 %v827
    %1111 = vmatprep.subr.bf16.mxu0 %v825
    %1112 = vmatpush1.bf16.msra.mxu0 %v824
    %1113 = vmatprep.subr.bf16.mxu0 %v822
    %1114 = vmatpush1.bf16.msra.mxu0 %v821
    %1115 = vmatprep.subr.bf16.mxu0 %v819
    %1116 = vmatpush1.bf16.msra.mxu0 %v818
    %1117 = vmatprep.subr.bf16.mxu0 %v816
    %1118 = vmatpush1.bf16.msra.mxu0 %v815
    %1119 = vmatprep.subr.bf16.mxu0 %v813
    %1120 = vmatpush1.bf16.msra.mxu0 %v812
    %1121 = vmatprep.subr.bf16.mxu0 %v810
    %1122 = vmatpush1.bf16.msra.mxu0 %v809
    %1123 = vmatprep.subr.bf16.mxu0 %v855
    %1124 = vmatpush2.bf16.msra.mxu0 %v854
    %1125 = vmatprep.subr.bf16.mxu0 %v852
    %1126 = vmatpush2.bf16.msra.mxu0 %v851
    %1127 = vmatprep.subr.bf16.mxu0 %v849
    %1128 = vmatpush2.bf16.msra.mxu0 %v848
    %1129 = vmatprep.subr.bf16.mxu0 %v846
    %1130 = vmatpush2.bf16.msra.mxu0 %v845
    %1131 = vmatprep.subr.bf16.mxu0 %v843
    %1132 = vmatpush2.bf16.msra.mxu0 %v842
    %1133 = vmatprep.subr.bf16.mxu0 %v840
    %1134 = vmatpush2.bf16.msra.mxu0 %v839
    %1135 = vmatprep.subr.bf16.mxu0 %v837
    %1136 = vmatpush2.bf16.msra.mxu0 %v836
    %1137 = vmatprep.subr.bf16.mxu0 %v834
    %1138 = vmatpush2.bf16.msra.mxu0 %v833
    %1139 = vmatprep.mubr.bf16.mxu0 %v307
    %1140 = vmatmul.mubr.bf16.gmra.mxu0 %v306
    %v1141 = vpop.f32.mrf.mxu0
    %v1142 = vadd.f32 %v272, %v1141
    %v1143 = vpop.f32.mrf.mxu0
    %v1144 = vadd.f32 %v276, %v1143
    %v1145 = vpop.f32.mrf.mxu0
    %v1146 = vadd.f32 %v272, %v1145
    %v1147 = vpop.f32.mrf.mxu0
    %v1148 = vadd.f32 %v276, %v1147
    %1149 = vdwg.mxu0
    %1150 = vmatprep.subr.bf16.mxu0 %v879
    %1151 = vmatpush1.bf16.msra.mxu0 %v878
    %1152 = vmatprep.subr.bf16.mxu0 %v876
    %1153 = vmatpush1.bf16.msra.mxu0 %v875
    %1154 = vmatprep.subr.bf16.mxu0 %v873
    %1155 = vmatpush1.bf16.msra.mxu0 %v872
    %1156 = vmatprep.subr.bf16.mxu0 %v870
    %1157 = vmatpush1.bf16.msra.mxu0 %v869
    %1158 = vmatprep.subr.bf16.mxu0 %v867
    %1159 = vmatpush1.bf16.msra.mxu0 %v866
    %1160 = vmatprep.subr.bf16.mxu0 %v864
    %1161 = vmatpush1.bf16.msra.mxu0 %v863
    %1162 = vmatprep.subr.bf16.mxu0 %v861
    %1163 = vmatpush1.bf16.msra.mxu0 %v860
    %1164 = vmatprep.subr.bf16.mxu0 %v858
    %1165 = vmatpush1.bf16.msra.mxu0 %v857
    %1166 = vmatprep.subr.bf16.mxu0 %v903
    %1167 = vmatpush2.bf16.msra.mxu0 %v902
    %1168 = vmatprep.subr.bf16.mxu0 %v900
    %1169 = vmatpush2.bf16.msra.mxu0 %v899
    %1170 = vmatprep.subr.bf16.mxu0 %v897
    %1171 = vmatpush2.bf16.msra.mxu0 %v896
    %1172 = vmatprep.subr.bf16.mxu0 %v894
    %1173 = vmatpush2.bf16.msra.mxu0 %v893
    %1174 = vmatprep.subr.bf16.mxu0 %v891
    %1175 = vmatpush2.bf16.msra.mxu0 %v890
    %1176 = vmatprep.subr.bf16.mxu0 %v888
    %1177 = vmatpush2.bf16.msra.mxu0 %v887
    %1178 = vmatprep.subr.bf16.mxu0 %v885
    %1179 = vmatpush2.bf16.msra.mxu0 %v884
    %1180 = vmatprep.subr.bf16.mxu0 %v882
    %1181 = vmatpush2.bf16.msra.mxu0 %v881
    %1182 = vmatprep.mubr.bf16.mxu0 %v309
    %1183 = vmatmul.mubr.bf16.gmra.mxu0 %v308
    %v1184 = vpop.f32.mrf.mxu0
    %v1185 = vadd.f32 %v1142, %v1184
    %v1186 = vpop.f32.mrf.mxu0
    %v1187 = vadd.f32 %v1144, %v1186
    %v1188 = vpop.f32.mrf.mxu0
    %v1189 = vadd.f32 %v1146, %v1188
    %v1190 = vpop.f32.mrf.mxu0
    %v1191 = vadd.f32 %v1148, %v1190
    %1192 = vdwg.mxu0
    %1193 = vmatprep.subr.bf16.mxu0 %v927
    %1194 = vmatpush1.bf16.msra.mxu0 %v926
    %1195 = vmatprep.subr.bf16.mxu0 %v924
    %1196 = vmatpush1.bf16.msra.mxu0 %v923
    %1197 = vmatprep.subr.bf16.mxu0 %v921
    %1198 = vmatpush1.bf16.msra.mxu0 %v920
    %1199 = vmatprep.subr.bf16.mxu0 %v918
    %1200 = vmatpush1.bf16.msra.mxu0 %v917
    %1201 = vmatprep.subr.bf16.mxu0 %v915
    %1202 = vmatpush1.bf16.msra.mxu0 %v914
    %1203 = vmatprep.subr.bf16.mxu0 %v912
    %1204 = vmatpush1.bf16.msra.mxu0 %v911
    %1205 = vmatprep.subr.bf16.mxu0 %v909
    %1206 = vmatpush1.bf16.msra.mxu0 %v908
    %1207 = vmatprep.subr.bf16.mxu0 %v906
    %1208 = vmatpush1.bf16.msra.mxu0 %v905
    %1209 = vmatprep.subr.bf16.mxu0 %v951
    %1210 = vmatpush2.bf16.msra.mxu0 %v950
    %1211 = vmatprep.subr.bf16.mxu0 %v948
    %1212 = vmatpush2.bf16.msra.mxu0 %v947
    %1213 = vmatprep.subr.bf16.mxu0 %v945
    %1214 = vmatpush2.bf16.msra.mxu0 %v944
    %1215 = vmatprep.subr.bf16.mxu0 %v942
    %1216 = vmatpush2.bf16.msra.mxu0 %v941
    %1217 = vmatprep.subr.bf16.mxu0 %v939
    %1218 = vmatpush2.bf16.msra.mxu0 %v938
    %1219 = vmatprep.subr.bf16.mxu0 %v936
    %1220 = vmatpush2.bf16.msra.mxu0 %v935
    %1221 = vmatprep.subr.bf16.mxu0 %v933
    %1222 = vmatpush2.bf16.msra.mxu0 %v932
    %1223 = vmatprep.subr.bf16.mxu0 %v930
    %1224 = vmatpush2.bf16.msra.mxu0 %v929
    %1225 = vmatprep.mubr.bf16.mxu0 %v311
    %1226 = vmatmul.mubr.bf16.gmra.mxu0 %v310
    %v1227 = vpop.f32.mrf.mxu0
    %v1228 = vadd.f32 %v1185, %v1227
    %v1229 = vpop.f32.mrf.mxu0
    %v1230 = vadd.f32 %v1187, %v1229
    %v1231 = vpop.f32.mrf.mxu0
    %v1232 = vadd.f32 %v1189, %v1231
    %v1233 = vpop.f32.mrf.mxu0
    %v1234 = vadd.f32 %v1191, %v1233
    %1235 = vdwg.mxu0
    %1236 = vmatprep.subr.bf16.mxu0 0
    %1237 = vmatpush1.bf16.msra.mxu0 0
    %1238 = vmatprep.subr.bf16.mxu0 0
    %1239 = vmatpush1.bf16.msra.mxu0 0
    %1240 = vmatprep.subr.bf16.mxu0 0
    %1241 = vmatpush1.bf16.msra.mxu0 0
    %1242 = vmatprep.subr.bf16.mxu0 0
    %1243 = vmatpush1.bf16.msra.mxu0 0
    %1244 = vmatprep.subr.bf16.mxu0 0
    %1245 = vmatpush1.bf16.msra.mxu0 0
    %1246 = vmatprep.subr.bf16.mxu0 0
    %1247 = vmatpush1.bf16.msra.mxu0 0
    %1248 = vmatprep.subr.bf16.mxu0 0
    %1249 = vmatpush1.bf16.msra.mxu0 0
    %1250 = vmatprep.subr.bf16.mxu0 %v954
    %1251 = vmatpush1.bf16.msra.mxu0 %v953
    %1252 = vmatprep.subr.bf16.mxu0 0
    %1253 = vmatpush2.bf16.msra.mxu0 0
    %1254 = vmatprep.subr.bf16.mxu0 0
    %1255 = vmatpush2.bf16.msra.mxu0 0
    %1256 = vmatprep.subr.bf16.mxu0 0
    %1257 = vmatpush2.bf16.msra.mxu0 0
    %1258 = vmatprep.subr.bf16.mxu0 0
    %1259 = vmatpush2.bf16.msra.mxu0 0
    %1260 = vmatprep.subr.bf16.mxu0 0
    %1261 = vmatpush2.bf16.msra.mxu0 0
    %1262 = vmatprep.subr.bf16.mxu0 0
    %1263 = vmatpush2.bf16.msra.mxu0 0
    %1264 = vmatprep.subr.bf16.mxu0 0
    %1265 = vmatpush2.bf16.msra.mxu0 0
    %1266 = vmatprep.subr.bf16.mxu0 0
    %1267 = vmatpush2.bf16.msra.mxu0 0
    %1268 = vmatprep.mubr.bf16.mxu0 0
    %1269 = vmatmul.mubr.bf16.gmra.mxu0 %v1105
    %v1270 = vpop.f32.mrf.mxu0
    %v1271 = vadd.f32 %v1228, %v1270
    %v1272 = vpop.f32.mrf.mxu0
    %v1273 = vadd.f32 %v1230, %v1272
    %v1274 = vpop.f32.mrf.mxu0
    %v1275 = vadd.f32 %v1232, %v1274
    %v1276 = vpop.f32.mrf.mxu0
    %v1277 = vadd.f32 %v1234, %v1276
    %1278 = vdwg.mxu0
    %1279 = vmatprep.subr.bf16.mxu0 0
    %1280 = vmatpush1.bf16.msra.mxu0 %v832
    %1281 = vmatprep.subr.bf16.mxu0 0
    %1282 = vmatpush1.bf16.msra.mxu0 %v829
    %1283 = vmatprep.subr.bf16.mxu0 0
    %1284 = vmatpush1.bf16.msra.mxu0 %v826
    %1285 = vmatprep.subr.bf16.mxu0 0
    %1286 = vmatpush1.bf16.msra.mxu0 %v823
    %1287 = vmatprep.subr.bf16.mxu0 0
    %1288 = vmatpush1.bf16.msra.mxu0 %v820
    %1289 = vmatprep.subr.bf16.mxu0 0
    %1290 = vmatpush1.bf16.msra.mxu0 %v817
    %1291 = vmatprep.subr.bf16.mxu0 0
    %1292 = vmatpush1.bf16.msra.mxu0 %v814
    %1293 = vmatprep.subr.bf16.mxu0 0
    %1294 = vmatpush1.bf16.msra.mxu0 %v811
    %1295 = vmatprep.subr.bf16.mxu0 0
    %1296 = vmatpush2.bf16.msra.mxu0 %v856
    %1297 = vmatprep.subr.bf16.mxu0 0
    %1298 = vmatpush2.bf16.msra.mxu0 %v853
    %1299 = vmatprep.subr.bf16.mxu0 0
    %1300 = vmatpush2.bf16.msra.mxu0 %v850
    %1301 = vmatprep.subr.bf16.mxu0 0
    %1302 = vmatpush2.bf16.msra.mxu0 %v847
    %1303 = vmatprep.subr.bf16.mxu0 0
    %1304 = vmatpush2.bf16.msra.mxu0 %v844
    %1305 = vmatprep.subr.bf16.mxu0 0
    %1306 = vmatpush2.bf16.msra.mxu0 %v841
    %1307 = vmatprep.subr.bf16.mxu0 0
    %1308 = vmatpush2.bf16.msra.mxu0 %v838
    %1309 = vmatprep.subr.bf16.mxu0 0
    %1310 = vmatpush2.bf16.msra.mxu0 %v835
    %1311 = vmatprep.mubr.bf16.mxu0 %v307
    %1312 = vmatmul.mubr.bf16.gmra.mxu0 %v306
    %v1313 = vpop.f32.mrf.mxu0
    %v1314 = vadd.f32 %v280, %v1313
    %v1315 = vpop.f32.mrf.mxu0
    %v1316 = vpop.f32.mrf.mxu0
    %v1317 = vadd.f32 %v280, %v1316
    %v1318 = vpop.f32.mrf.mxu0
    %1319 = vdwg.mxu0
    %1320 = vmatprep.subr.bf16.mxu0 0
    %1321 = vmatpush1.bf16.msra.mxu0 %v880
    %1322 = vmatprep.subr.bf16.mxu0 0
    %1323 = vmatpush1.bf16.msra.mxu0 %v877
    %1324 = vmatprep.subr.bf16.mxu0 0
    %1325 = vmatpush1.bf16.msra.mxu0 %v874
    %1326 = vmatprep.subr.bf16.mxu0 0
    %1327 = vmatpush1.bf16.msra.mxu0 %v871
    %1328 = vmatprep.subr.bf16.mxu0 0
    %1329 = vmatpush1.bf16.msra.mxu0 %v868
    %1330 = vmatprep.subr.bf16.mxu0 0
    %1331 = vmatpush1.bf16.msra.mxu0 %v865
    %1332 = vmatprep.subr.bf16.mxu0 0
    %1333 = vmatpush1.bf16.msra.mxu0 %v862
    %1334 = vmatprep.subr.bf16.mxu0 0
    %1335 = vmatpush1.bf16.msra.mxu0 %v859
    %1336 = vmatprep.subr.bf16.mxu0 0
    %1337 = vmatpush2.bf16.msra.mxu0 %v904
    %1338 = vmatprep.subr.bf16.mxu0 0
    %1339 = vmatpush2.bf16.msra.mxu0 %v901
    %1340 = vmatprep.subr.bf16.mxu0 0
    %1341 = vmatpush2.bf16.msra.mxu0 %v898
    %1342 = vmatprep.subr.bf16.mxu0 0
    %1343 = vmatpush2.bf16.msra.mxu0 %v895
    %1344 = vmatprep.subr.bf16.mxu0 0
    %1345 = vmatpush2.bf16.msra.mxu0 %v892
    %1346 = vmatprep.subr.bf16.mxu0 0
    %1347 = vmatpush2.bf16.msra.mxu0 %v889
    %1348 = vmatprep.subr.bf16.mxu0 0
    %1349 = vmatpush2.bf16.msra.mxu0 %v886
    %1350 = vmatprep.subr.bf16.mxu0 0
    %1351 = vmatpush2.bf16.msra.mxu0 %v883
    %1352 = vmatprep.mubr.bf16.mxu0 %v309
    %1353 = vmatmul.mubr.bf16.gmra.mxu0 %v308
    %v1354 = vpop.f32.mrf.mxu0
    %v1355 = vadd.f32 %v1314, %v1354
    %v1356 = vpop.f32.mrf.mxu0
    %v1357 = vpop.f32.mrf.mxu0
    %v1358 = vadd.f32 %v1317, %v1357
    %v1359 = vpop.f32.mrf.mxu0
    %1360 = vdwg.mxu0
    %1361 = vmatprep.subr.bf16.mxu0 0
    %1362 = vmatpush1.bf16.msra.mxu0 %v928
    %1363 = vmatprep.subr.bf16.mxu0 0
    %1364 = vmatpush1.bf16.msra.mxu0 %v925
    %1365 = vmatprep.subr.bf16.mxu0 0
    %1366 = vmatpush1.bf16.msra.mxu0 %v922
    %1367 = vmatprep.subr.bf16.mxu0 0
    %1368 = vmatpush1.bf16.msra.mxu0 %v919
    %1369 = vmatprep.subr.bf16.mxu0 0
    %1370 = vmatpush1.bf16.msra.mxu0 %v916
    %1371 = vmatprep.subr.bf16.mxu0 0
    %1372 = vmatpush1.bf16.msra.mxu0 %v913
    %1373 = vmatprep.subr.bf16.mxu0 0
    %1374 = vmatpush1.bf16.msra.mxu0 %v910
    %1375 = vmatprep.subr.bf16.mxu0 0
    %1376 = vmatpush1.bf16.msra.mxu0 %v907
    %1377 = vmatprep.subr.bf16.mxu0 0
    %1378 = vmatpush2.bf16.msra.mxu0 %v952
    %1379 = vmatprep.subr.bf16.mxu0 0
    %1380 = vmatpush2.bf16.msra.mxu0 %v949
    %1381 = vmatprep.subr.bf16.mxu0 0
    %1382 = vmatpush2.bf16.msra.mxu0 %v946
    %1383 = vmatprep.subr.bf16.mxu0 0
    %1384 = vmatpush2.bf16.msra.mxu0 %v943
    %1385 = vmatprep.subr.bf16.mxu0 0
    %1386 = vmatpush2.bf16.msra.mxu0 %v940
    %1387 = vmatprep.subr.bf16.mxu0 0
    %1388 = vmatpush2.bf16.msra.mxu0 %v937
    %1389 = vmatprep.subr.bf16.mxu0 0
    %1390 = vmatpush2.bf16.msra.mxu0 %v934
    %1391 = vmatprep.subr.bf16.mxu0 0
    %1392 = vmatpush2.bf16.msra.mxu0 %v931
    %1393 = vmatprep.mubr.bf16.mxu0 %v311
    %1394 = vmatmul.mubr.bf16.gmra.mxu0 %v310
    %v1395 = vpop.f32.mrf.mxu0
    %v1396 = vadd.f32 %v1355, %v1395
    %v1397 = vpop.f32.mrf.mxu0
    %v1398 = vpop.f32.mrf.mxu0
    %v1399 = vadd.f32 %v1358, %v1398
    %v1400 = vpop.f32.mrf.mxu0
    %1401 = vdwg.mxu0
    %1402 = vmatprep.subr.bf16.mxu0 0
    %1403 = vmatpush1.bf16.msra.mxu0 0
    %1404 = vmatprep.subr.bf16.mxu0 0
    %1405 = vmatpush1.bf16.msra.mxu0 0
    %1406 = vmatprep.subr.bf16.mxu0 0
    %1407 = vmatpush1.bf16.msra.mxu0 0
    %1408 = vmatprep.subr.bf16.mxu0 0
    %1409 = vmatpush1.bf16.msra.mxu0 0
    %1410 = vmatprep.subr.bf16.mxu0 0
    %1411 = vmatpush1.bf16.msra.mxu0 0
    %1412 = vmatprep.subr.bf16.mxu0 0
    %1413 = vmatpush1.bf16.msra.mxu0 0
    %1414 = vmatprep.subr.bf16.mxu0 0
    %1415 = vmatpush1.bf16.msra.mxu0 0
    %1416 = vmatprep.subr.bf16.mxu0 0
    %1417 = vmatpush1.bf16.msra.mxu0 %v955
    %1418 = vmatprep.subr.bf16.mxu0 0
    %1419 = vmatpush2.bf16.msra.mxu0 0
    %1420 = vmatprep.subr.bf16.mxu0 0
    %1421 = vmatpush2.bf16.msra.mxu0 0
    %1422 = vmatprep.subr.bf16.mxu0 0
    %1423 = vmatpush2.bf16.msra.mxu0 0
    %1424 = vmatprep.subr.bf16.mxu0 0
    %1425 = vmatpush2.bf16.msra.mxu0 0
    %1426 = vmatprep.subr.bf16.mxu0 0
    %1427 = vmatpush2.bf16.msra.mxu0 0
    %1428 = vmatprep.subr.bf16.mxu0 0
    %1429 = vmatpush2.bf16.msra.mxu0 0
    %1430 = vmatprep.subr.bf16.mxu0 0
    %1431 = vmatpush2.bf16.msra.mxu0 0
    %1432 = vmatprep.subr.bf16.mxu0 0
    %1433 = vmatpush2.bf16.msra.mxu0 0
    %1434 = vmatprep.mubr.bf16.mxu0 0
    %1435 = vmatmul.mubr.bf16.gmra.mxu0 %v1105
    %v1436 = vpop.f32.mrf.mxu0
    %v1437 = vadd.f32 %v1396, %v1436
    %v1438 = vpop.f32.mrf.mxu0
    %v1439 = vpop.f32.mrf.mxu0
    %v1440 = vadd.f32 %v1399, %v1439
    %v1441 = vpop.f32.mrf.mxu0
    %1442 = vdwg.mxu0
    %v1443 = vmax.f32 %v1271, 0.0
    %v1444 = vmax.f32 %v1273, 0.0
    %v1445 = vmax.f32 %v1437, 0.0
    %v1446 = vmax.f32 %v1275, 0.0
    %v1447 = vmax.f32 %v1277, 0.0
    %v1448 = vmax.f32 %v1440, 0.0
    %v1449 = vpack.c.bf16 %v1446, %v1443
    %v1450 = vpack.c.bf16 %v1447, %v1444
    %v1451 = vpack.c.bf16 %v1448, %v1445
    %v1452 = vld [vmem:[#allocation7] sm:$0xf]
    %v1453 = vld [vmem:[#allocation7 + $0x4] sm:$0xf]
    %v1454 = vld [vmem:[#allocation7 + $0x8] sm:$0xf]
    %v1455 = vld [vmem:[#allocation7 + $0xc] sm:$0xf]
    %v1456 = vld [vmem:[#allocation7 + $0x10] sm:$0xf]
    %v1457 = vld [vmem:[#allocation7 + $0x14] sm:$0xf]
    %v1458 = vld [vmem:[#allocation7 + $0x18] sm:$0xf]
    %v1459 = vld [vmem:[#allocation7 + $0x1c] sm:$0xf]
    %v1460 = vld [vmem:[#allocation7 + $0x20] sm:$0xf]
    %v1461 = vld [vmem:[#allocation7 + $0x24] sm:$0xf]
    %v1462 = vld [vmem:[#allocation7 + $0x28] sm:$0xf]
    %v1463 = vld [vmem:[#allocation7 + $0x2c] sm:$0xf]
    %v1464 = vld [vmem:[#allocation7 + $0x30] sm:$0xf]
    %v1465 = vld [vmem:[#allocation7 + $0x34] sm:$0xf]
    %v1466 = vld [vmem:[#allocation7 + $0x38] sm:$0xf]
    %v1467 = vld [vmem:[#allocation7 + $0x3c] sm:$0xf]
    %v1468 = vld [vmem:[#allocation7 + $0x40] sm:$0xf]
    %v1469 = vld [vmem:[#allocation7 + $0x44] sm:$0xf]
    %v1470 = vld [vmem:[#allocation7 + $0x48] sm:$0xf]
    %v1471 = vld [vmem:[#allocation7 + $0x4c] sm:$0xf]
    %v1472 = vld [vmem:[#allocation7 + $0x50] sm:$0xf]
    %v1473 = vld [vmem:[#allocation7 + $0x54] sm:$0xf]
    %v1474 = vld [vmem:[#allocation7 + $0x58] sm:$0xf]
    %v1475 = vld [vmem:[#allocation7 + $0x5c] sm:$0xf]
    %v1476 = vld [vmem:[#allocation7 + $0x60] sm:$0xf]
    %v1477 = vld [vmem:[#allocation7 + $0x64] sm:$0xf]
    %v1478 = vld [vmem:[#allocation7 + $0x68] sm:$0xf]
    %v1479 = vld [vmem:[#allocation7 + $0x6c] sm:$0xf]
    %v1480 = vld [vmem:[#allocation7 + $0x70] sm:$0xf]
    %v1481 = vld [vmem:[#allocation7 + $0x74] sm:$0xf]
    %v1482 = vld [vmem:[#allocation7 + $0x78] sm:$0xf]
    %v1483 = vld [vmem:[#allocation7 + $0x7c] sm:$0xf]
    %v1484 = vld [vmem:[#allocation7 + $0x80] sm:$0xf]
    %v1485 = vld [vmem:[#allocation7 + $0x84] sm:$0xf]
    %v1486 = vld [vmem:[#allocation7 + $0x88] sm:$0xf]
    %v1487 = vld [vmem:[#allocation7 + $0x8c] sm:$0xf]
    %v1488 = vld [vmem:[#allocation7 + $0x90] sm:$0xf]
    %v1489 = vld [vmem:[#allocation7 + $0x94] sm:$0xf]
    %v1490 = vld [vmem:[#allocation7 + $0x98] sm:$0xf]
    %v1491 = vld [vmem:[#allocation7 + $0x9c] sm:$0xf]
    %v1492 = vld [vmem:[#allocation7 + $0xa0] sm:$0xf]
    %v1493 = vld [vmem:[#allocation7 + $0xa4] sm:$0xf]
    %v1494 = vld [vmem:[#allocation7 + $0xa8] sm:$0xf]
    %v1495 = vld [vmem:[#allocation7 + $0xac] sm:$0xf]
    %v1496 = vld [vmem:[#allocation7 + $0xb0] sm:$0xf]
    %v1497 = vld [vmem:[#allocation7 + $0xb4] sm:$0xf]
    %v1498 = vld [vmem:[#allocation7 + $0xb8] sm:$0xf]
    %v1499 = vld [vmem:[#allocation7 + $0xbc] sm:$0xf]
    %v1500 = vld [vmem:[%s4] sm:$0x1]
    %v1502 = vlaneseq
    %v1503 = vshrl.u32 %v1502, 7
    %v1504 = vsub.s32 0, %v1503
    %v1505 = vrot.slane %v1500, %v1504
    %v1555 = vunpack.c.l.b16 %v1452
    %v1556 = vunpack.c.l.b16 %v1453
    %v1557 = vunpack.c.l.b16 %v1454
    %v1558 = vunpack.c.l.b16 %v1455
    %v1559 = vunpack.c.l.b16 %v1456
    %v1560 = vunpack.c.l.b16 %v1457
    %v1561 = vunpack.c.l.b16 %v1458
    %v1562 = vunpack.c.l.b16 %v1459
    %v1563 = vunpack.c.l.b16 %v1460
    %v1564 = vunpack.c.l.b16 %v1461
    %v1565 = vunpack.c.l.b16 %v1462
    %v1566 = vunpack.c.l.b16 %v1463
    %v1567 = vunpack.c.l.b16 %v1464
    %v1568 = vunpack.c.l.b16 %v1465
    %v1569 = vunpack.c.l.b16 %v1466
    %v1570 = vunpack.c.l.b16 %v1467
    %v1571 = vunpack.c.l.b16 %v1468
    %v1572 = vunpack.c.l.b16 %v1469
    %v1573 = vunpack.c.l.b16 %v1470
    %v1574 = vunpack.c.l.b16 %v1471
    %v1575 = vunpack.c.l.b16 %v1472
    %v1576 = vunpack.c.l.b16 %v1473
    %v1577 = vunpack.c.l.b16 %v1474
    %v1578 = vunpack.c.l.b16 %v1475
    %v1579 = vunpack.c.l.b16 %v1476
    %v1580 = vunpack.c.l.b16 %v1477
    %v1581 = vunpack.c.l.b16 %v1478
    %v1582 = vunpack.c.l.b16 %v1479
    %v1583 = vunpack.c.l.b16 %v1480
    %v1584 = vunpack.c.l.b16 %v1481
    %v1585 = vunpack.c.l.b16 %v1482
    %v1586 = vunpack.c.l.b16 %v1483
    %v1587 = vunpack.c.l.b16 %v1484
    %v1588 = vunpack.c.l.b16 %v1485
    %v1589 = vunpack.c.l.b16 %v1486
    %v1590 = vunpack.c.l.b16 %v1487
    %v1591 = vunpack.c.l.b16 %v1488
    %v1592 = vunpack.c.l.b16 %v1489
    %v1593 = vunpack.c.l.b16 %v1490
    %v1594 = vunpack.c.l.b16 %v1491
    %v1595 = vunpack.c.l.b16 %v1492
    %v1596 = vunpack.c.l.b16 %v1493
    %v1597 = vunpack.c.l.b16 %v1494
    %v1598 = vunpack.c.l.b16 %v1495
    %v1599 = vunpack.c.l.b16 %v1496
    %v1600 = vunpack.c.l.b16 %v1497
    %v1601 = vunpack.c.l.b16 %v1498
    %v1602 = vunpack.c.l.b16 %v1499
    %v1603 = vpack.c.b16 %v1556, %v1555
    %v1604 = vpack.c.b16 %v1558, %v1557
    %v1605 = vpack.c.b16 %v1560, %v1559
    %v1606 = vpack.c.b16 %v1562, %v1561
    %v1607 = vpack.c.b16 %v1564, %v1563
    %v1608 = vpack.c.b16 %v1566, %v1565
    %v1609 = vpack.c.b16 %v1568, %v1567
    %v1610 = vpack.c.b16 %v1570, %v1569
    %v1611 = vpack.c.b16 %v1572, %v1571
    %v1612 = vpack.c.b16 %v1574, %v1573
    %v1613 = vpack.c.b16 %v1576, %v1575
    %v1614 = vpack.c.b16 %v1578, %v1577
    %v1615 = vpack.c.b16 %v1580, %v1579
    %v1616 = vpack.c.b16 %v1582, %v1581
    %v1617 = vpack.c.b16 %v1584, %v1583
    %v1618 = vpack.c.b16 %v1586, %v1585
    %v1619 = vpack.c.b16 %v1588, %v1587
    %v1620 = vpack.c.b16 %v1590, %v1589
    %v1621 = vpack.c.b16 %v1592, %v1591
    %v1622 = vpack.c.b16 %v1594, %v1593
    %v1623 = vpack.c.b16 %v1596, %v1595
    %v1624 = vpack.c.b16 %v1598, %v1597
    %v1625 = vpack.c.b16 %v1600, %v1599
    %v1626 = vpack.c.b16 %v1602, %v1601
    %1651 = vmatprep.subr.bf16.mxu0 0
    %1652 = vmatpush1.bf16.msra.mxu0 %v1610
    %1653 = vmatprep.subr.bf16.mxu0 0
    %1654 = vmatpush1.bf16.msra.mxu0 %v1609
    %1655 = vmatprep.subr.bf16.mxu0 0
    %1656 = vmatpush1.bf16.msra.mxu0 %v1608
    %1657 = vmatprep.subr.bf16.mxu0 0
    %1658 = vmatpush1.bf16.msra.mxu0 %v1607
    %1659 = vmatprep.subr.bf16.mxu0 0
    %1660 = vmatpush1.bf16.msra.mxu0 %v1606
    %1661 = vmatprep.subr.bf16.mxu0 0
    %1662 = vmatpush1.bf16.msra.mxu0 %v1605
    %1663 = vmatprep.subr.bf16.mxu0 0
    %1664 = vmatpush1.bf16.msra.mxu0 %v1604
    %1665 = vmatprep.subr.bf16.mxu0 0
    %1666 = vmatpush1.bf16.msra.mxu0 %v1603
    %1667 = vmatprep.subr.bf16.mxu0 0
    %1668 = vmatpush2.bf16.msra.mxu0 %v1618
    %1669 = vmatprep.subr.bf16.mxu0 0
    %1670 = vmatpush2.bf16.msra.mxu0 %v1617
    %1671 = vmatprep.subr.bf16.mxu0 0
    %1672 = vmatpush2.bf16.msra.mxu0 %v1616
    %1673 = vmatprep.subr.bf16.mxu0 0
    %1674 = vmatpush2.bf16.msra.mxu0 %v1615
    %1675 = vmatprep.subr.bf16.mxu0 0
    %1676 = vmatpush2.bf16.msra.mxu0 %v1614
    %1677 = vmatprep.subr.bf16.mxu0 0
    %1678 = vmatpush2.bf16.msra.mxu0 %v1613
    %1679 = vmatprep.subr.bf16.mxu0 0
    %1680 = vmatpush2.bf16.msra.mxu0 %v1612
    %1681 = vmatprep.subr.bf16.mxu0 0
    %1682 = vmatpush2.bf16.msra.mxu0 %v1611
    %1683 = vmatprep.mubr.bf16.mxu0 %v1450
    %1684 = vmatmul.mubr.bf16.gmra.mxu0 %v1449
    %v1685 = vpop.f32.mrf.mxu0
    %v1686 = vadd.f32 %v1505, %v1685
    %v1687 = vpop.f32.mrf.mxu0
    %v1688 = vpop.f32.mrf.mxu0
    %v1689 = vadd.f32 %v1505, %v1688
    %v1690 = vpop.f32.mrf.mxu0
    %1691 = vdwg.mxu0
    %1692 = vmatprep.subr.bf16.mxu0 0
    %1693 = vmatpush1.bf16.msra.mxu0 %v1626
    %1694 = vmatprep.subr.bf16.mxu0 0
    %1695 = vmatpush1.bf16.msra.mxu0 %v1625
    %1696 = vmatprep.subr.bf16.mxu0 0
    %1697 = vmatpush1.bf16.msra.mxu0 %v1624
    %1698 = vmatprep.subr.bf16.mxu0 0
    %1699 = vmatpush1.bf16.msra.mxu0 %v1623
    %1700 = vmatprep.subr.bf16.mxu0 0
    %1701 = vmatpush1.bf16.msra.mxu0 %v1622
    %1702 = vmatprep.subr.bf16.mxu0 0
    %1703 = vmatpush1.bf16.msra.mxu0 %v1621
    %1704 = vmatprep.subr.bf16.mxu0 0
    %1705 = vmatpush1.bf16.msra.mxu0 %v1620
    %1706 = vmatprep.subr.bf16.mxu0 0
    %1707 = vmatpush1.bf16.msra.mxu0 %v1619
    %1708 = vmatprep.subr.bf16.mxu0 0
    %1709 = vmatpush2.bf16.msra.mxu0 0
    %1710 = vmatprep.subr.bf16.mxu0 0
    %1711 = vmatpush2.bf16.msra.mxu0 0
    %1712 = vmatprep.subr.bf16.mxu0 0
    %1713 = vmatpush2.bf16.msra.mxu0 0
    %1714 = vmatprep.subr.bf16.mxu0 0
    %1715 = vmatpush2.bf16.msra.mxu0 0
    %1716 = vmatprep.subr.bf16.mxu0 0
    %1717 = vmatpush2.bf16.msra.mxu0 0
    %1718 = vmatprep.subr.bf16.mxu0 0
    %1719 = vmatpush2.bf16.msra.mxu0 0
    %1720 = vmatprep.subr.bf16.mxu0 0
    %1721 = vmatpush2.bf16.msra.mxu0 0
    %1722 = vmatprep.subr.bf16.mxu0 0
    %1723 = vmatpush2.bf16.msra.mxu0 0
    %1724 = vmatprep.mubr.bf16.mxu0 0
    %1725 = vmatmul.mubr.bf16.gmra.mxu0 %v1451
    %v1726 = vpop.f32.mrf.mxu0
    %v1727 = vadd.f32 %v1686, %v1726
    %v1728 = vpop.f32.mrf.mxu0
    %v1729 = vpop.f32.mrf.mxu0
    %v1730 = vadd.f32 %v1689, %v1729
    %v1731 = vpop.f32.mrf.mxu0
    %1732 = vdwg.mxu0
    %1733 = vst [vmem:[#allocation8] sm:$0xff] %v1727
    %1734 = vst [vmem:[#allocation8 + $0x8] sm:$0xff] %v1730
    // Predicated region
    $region34: #{tpu_custom_call.1} parent=1 // pred_check
      _
    $region35: #{tpu_custom_call.1} parent=1 // pred_check_branch
      %1736 = sbr.rel (0) target = $region37
    $region36: #{tpu_custom_call.1} parent=1 // pred_region
      %s1738 = ssub.s32 256, 256
      %1739 = vsyncadd [#allocation4], %s1738
      %s1740 = sshll.u32 [#allocation8], 4
      %s1741 = int_to_ptr.vmem [resolvable:$true] %s1740
      %1746 = dma.vmem_to_hbm [thread:$0]  %s1741, 256, %s5, [#allocation4], 128, 128, 8
    $region37: #{tpu_custom_call.1} parent=1 // pred_fallthru
      _
    // Predicated region
    $region38: #{tpu_custom_call.1} parent=1 // pred_check
      _
    $region39: #{tpu_custom_call.1} parent=1 // pred_check_branch
      %1748 = sbr.rel (0) target = $region41
    $region40: #{tpu_custom_call.1} parent=1 // pred_region
      %1749 = dma.done [#allocation4], 256
    $region41: #{tpu_custom_call.1} parent=1 // pred_fallthru
      _
    %1750 = vsyncpa [#allocation3], 1
    %1751 = vsyncpa [#allocation6], 1
    %1752 = vsyncpa [#allocation4], 1

</llo_original>
